<compile_context>
chip_gen: v7x
topology: tpu7x:2x2x1
jax: 0.10.0
libtpu: 0.0.40
codegen_flags: <defaults>
</compile_context>

<pallas_src>
import random

import jax
import jax.numpy as jnp
import numpy as np
from jax import lax
from jax.experimental import pallas as pl
from jax.experimental.pallas import tpu as pltpu

_NSEM = 8  # max concurrent HBM->HBM frame DMAs in flight per core (power of 2)


def _make_gather_kernel(T, frames_per_shard, nsem):
    """Build the HBM->HBM frame-gather kernel.

    Kernel args:
      idx_ref : SMEM int32[T]      (scalar-prefetched keep indices)
      x_hbm   : HBM  [T, R, 128]   (raw input ref, memory_space=pl.ANY)
      o_hbm   : HBM  [T, R, 128]   (raw output ref, memory_space=pl.ANY)
      sem     : DMA semaphore array [nsem]

    Each grid step (shard) handles a contiguous range of output frames and
    issues one frame-sized dense-tile DMA per frame, keeping up to `nsem`
    copies in flight.

    INVARIANT: every DMA started in this kernel copies exactly one frame
    slab (same byte count).  The drain/wait path relies on this to account
    the semaphores with a dummy same-sized copy descriptor.
    """

    def kernel(idx_ref, x_hbm, o_hbm, sem):
        shard = pl.program_id(0)
        t0 = shard * frames_per_shard

        def wait_slot(slot):
            # Dummy descriptor used purely for its byte count (== one frame).
            pltpu.make_async_copy(x_hbm.at[0], o_hbm.at[0], sem.at[slot]).wait()

        def body(i, carry):
            t = t0 + i
            slot = i % nsem
            # Read the keep index BEFORE any semaphore wait: .wait() breaks
            # SMEM sst->sld forwarding even for unrelated addresses.
            src = idx_ref[t]

            @pl.when(jnp.asarray(i >= nsem))
            def _wait_prev():  # slot reused -> wait for copy i - nsem
                wait_slot(slot)

            pltpu.make_async_copy(x_hbm.at[src], o_hbm.at[t], sem.at[slot]).start()
            return carry

        # Static trip count; unroll so the LLO scheduler can pack several
        # descriptor issues per iteration of loop overhead.
        unroll = True if frames_per_shard <= 64 else 8
        lax.fori_loop(0, frames_per_shard, body, 0, unroll=unroll)

        # Drain the (at most nsem) copies still in flight for this shard.
        n_drain = min(frames_per_shard, nsem)
        for j in range(n_drain):
            wait_slot((frames_per_shard - n_drain + j) % nsem)

    return kernel


def _pallas_gather_frames(x3d, keep_idx, *, num_shards=1, nsem=_NSEM):
    """Return x3d[keep_idx] (whole-frame gather) via direct HBM->HBM DMAs.

    x3d:      [T, R, 128] array (any dtype); each frame is a dense slab of
              (8,128) HBM tiles, so one frame = one contiguous-tile DMA.
    keep_idx: [T] int32, values in [0, T).
    """
    T, R, L = x3d.shape
    assert L == 128, "last dim must be the 128-lane tile dim"

    # Keep trip counts static: only shard counts that evenly divide T.
    if num_shards < 1 or num_shards > T or T % num_shards != 0:
        num_shards = 1
    frames_per_shard = T // num_shards

    kernel = _make_gather_kernel(T, frames_per_shard, nsem)
    frame_bytes = R * L * x3d.dtype.itemsize

    return pl.pallas_call(
        kernel,
        out_shape=jax.ShapeDtypeStruct((T, R, L), x3d.dtype),
        grid_spec=pltpu.PrefetchScalarGridSpec(
            num_scalar_prefetch=1,            # keep_idx -> SMEM
            grid=(num_shards,),
            in_specs=[pl.BlockSpec(memory_space=pl.ANY)],   # x stays in HBM
            out_specs=pl.BlockSpec(memory_space=pl.ANY),    # out stays in HBM
            scratch_shapes=[pltpu.SemaphoreType.DMA((nsem,))],
        ),
        compiler_params=pltpu.CompilerParams(
            # Disjoint output-frame ranges per shard -> safe for multi-core
            # splitting; "arbitrary" when there is nothing to parallelize.
            dimension_semantics=(
                ("arbitrary",) if num_shards == 1 else ("parallel",)),
            has_side_effects=True,  # output is written via manual DMA only
        ),
        cost_estimate=pl.CostEstimate(
            flops=0, transcendentals=0,
            bytes_accessed=2 * T * frame_bytes),
    )(keep_idx, x3d)


class RandomDropFramesPallas:
    """JAX/Pallas port of RandomDropFrames(max_drop, p).

    Returns (out, keep_indices); keep_indices is exposed for testing.
    Host-side Python RNG mirrors the PyTorch module's `random` usage, so the
    op is not jit/vmap-reproducible end-to-end (same as the original).
    """

    def __init__(self, max_drop=2, p=0.5, seed=0,
                 min_pallas_frame_bytes=128 * 1024,
                 num_shards=1, nsem=_NSEM):
        self.max_drop = max_drop
        self.p = p
        # Below this PER-FRAME size, plain XLA gather beats per-frame DMA
        # descriptor issue.  (Consider lowering on v5e where the fixed
        # launch cost is amortized later against ~0.82 TB/s HBM.)
        self.min_pallas_frame_bytes = min_pallas_frame_bytes
        self.num_shards = num_shards
        self.nsem = nsem
        self._rng = random.Random(seed)

    def _make_keep_indices(self, T):
        if self._rng.random() < self.p:
            drop_count = self._rng.randint(1, min(self.max_drop, T - 1))
            drop_indices = sorted(self._rng.sample(range(T), drop_count))
            keep_indices = list(range(T))
            for idx in drop_indices:
                keep_indices.remove(idx)
            while len(keep_indices) < T:
                keep_indices.append(keep_indices[-1])
            return keep_indices
        return list(range(T))

    def __call__(self, x):
        T = x.shape[0]
        keep_indices = self._make_keep_indices(T)

        # Identity fast path: no-drop branch (prob. 1-p) -> no device work.
        if keep_indices == list(range(T)):
            return x, keep_indices

        keep_idx = jnp.asarray(keep_indices, dtype=jnp.int32)

        frame_shape = x.shape[1:]
        D = int(np.prod(frame_shape)) if frame_shape else 1
        frame_bytes = D * x.dtype.itemsize

        # Small or non-tile-aligned frames: XLA gather (avoids issue-latency
        # bound tiny DMAs and pad/unpad HBM passes).
        if (D % 128 != 0) or (frame_bytes < self.min_pallas_frame_bytes):
            return x[keep_idx], keep_indices

        # Tile-aligned view: frame becomes the minor two dims, so each frame
        # is a dense slab of (8,128) HBM tiles -> one contiguous-tile DMA.
        x3d = x.reshape(T, D // 128, 128)
        out3d = _pallas_gather_frames(
            x3d, keep_idx, num_shards=self.num_shards, nsem=self.nsem)
        return out3d.reshape((T,) + frame_shape), keep_indices


if __name__ == "__main__":
    key = jax.random.PRNGKey(0)
    # Small shapes consistent with the module: T=8 frames of [C=4, H=16, W=16]
    # (D = 1024 = 8 * 128, i.e. exactly one (8,128) tile per frame).
    x = jax.random.normal(key, (8, 4, 16, 16), dtype=jnp.float32)
    T = x.shape[0]

    # 1) Direct kernel test with a forced drop pattern (drop frames 2 and 5).
    forced_keep = [0, 1, 3, 4, 6, 7, 7, 7]
    keep_idx = jnp.asarray(forced_keep, dtype=jnp.int32)
    x3d = x.reshape(T, -1, 128)
    out3d = _pallas_gather_frames(x3d, keep_idx)
    out_forced = jax.block_until_ready(out3d.reshape(x.shape))
    ref_forced = x[keep_idx]
    np.testing.assert_allclose(
        np.asarray(out_forced), np.asarray(ref_forced), rtol=0, atol=0)

    # 2) Module end-to-end with p=1.0 (drop branch always taken) and the
    #    per-frame size threshold disabled so the Pallas path is exercised.
    mod = RandomDropFramesPallas(max_drop=2, p=1.0, seed=0,
                                 min_pallas_frame_bytes=0)
    out, keep_indices = mod(x)
    out = jax.block_until_ready(out)
    assert keep_indices != list(range(T))
    ref = x[jnp.asarray(keep_indices, dtype=jnp.int32)]
    np.testing.assert_allclose(np.asarray(out), np.asarray(ref), rtol=0, atol=0)

    # 3) Identity fast path (p=0.0): returns x itself, no kernel launch.
    mod_id = RandomDropFramesPallas(max_drop=2, p=0.0, seed=0)
    out_id, keep_id = mod_id(x)
    assert keep_id == list(range(T))
    assert out_id is x

    # 4) Small-frame / non-aligned fallback path (XLA gather).
    x_small = jax.random.normal(key, (8, 3, 5, 7), dtype=jnp.float32)
    mod_small = RandomDropFramesPallas(max_drop=2, p=1.0, seed=1)
    out_small, keep_small = mod_small(x_small)
    out_small = jax.block_until_ready(out_small)
    ref_small = x_small[jnp.asarray(keep_small, dtype=jnp.int32)]
    np.testing.assert_allclose(
        np.asarray(out_small), np.asarray(ref_small), rtol=0, atol=0)

    print("KERNEL_OK")
</pallas_src>

<mosaic_0001>
module attributes {stable_mosaic.version = 11 : i64} {
  func.func @kernel(%arg0: i32, %arg1: memref<8xi32, #tpu.memory_space<smem>>, %arg2: memref<8x8x128xf32, #tpu.memory_space<any>>, %arg3: memref<8x8x128xf32, #tpu.memory_space<any>>, %arg4: memref<8x!tpu.dma_semaphore, #tpu.memory_space<semaphore_mem>>) attributes {dimension_semantics = [#tpu.dimension_semantics<arbitrary>], iteration_bounds = array<i64: 1>, scalar_prefetch = 1 : i64, scratch_operands = 1 : i64, tpu.core_type = #tpu.core_type<tc>, window_params = [{}, {}]} {
    %c8_i32 = arith.constant 8 : i32
    %0 = arith.muli %arg0, %c8_i32 : i32
    %c0_i32 = arith.constant 0 : i32
    %1 = arith.addi %0, %c0_i32 : i32
    %c8_i32_0 = arith.constant 8 : i32
    %c0_i32_1 = arith.constant 0 : i32
    %2 = arith.cmpi eq, %c8_i32_0, %c0_i32_1 : i32
    %c1_i32 = arith.constant 1 : i32
    %3 = arith.select %2, %c1_i32, %c8_i32_0 : i32
    %4 = arith.remsi %c0_i32, %3 : i32
    %c0_i32_2 = arith.constant 0 : i32
    %5 = arith.cmpi ne, %4, %c0_i32_2 : i32
    %c0_i32_3 = arith.constant 0 : i32
    %6 = arith.cmpi slt, %4, %c0_i32_3 : i32
    %c0_i32_4 = arith.constant 0 : i32
    %7 = arith.cmpi slt, %3, %c0_i32_4 : i32
    %8 = arith.xori %6, %7 : i1
    %9 = arith.andi %8, %5 : i1
    %10 = arith.addi %4, %3 : i32
    %11 = arith.select %9, %10, %4 : i32
    %12 = arith.index_cast %1 : i32 to index
    %13 = memref.load %arg1[%12] : memref<8xi32, #tpu.memory_space<smem>>
    %c8_i32_5 = arith.constant 8 : i32
    %14 = arith.cmpi sge, %c0_i32, %c8_i32_5 : i32
    %15 = arith.extui %14 : i1 to i32
    %c0_i32_6 = arith.constant 0 : i32
    %16 = arith.cmpi ne, %15, %c0_i32_6 : i32
    scf.if %16 {
      %c0_i32_153 = arith.constant 0 : i32
      %c0_i32_154 = arith.constant 0 : i32
      %c0_i32_155 = arith.constant 0 : i32
      %c0_i32_156 = arith.constant 0 : i32
      %225 = tpu.memref_slice %arg2[%c0_i32_153, %c0_i32_155, %c0_i32_156] : memref<8x8x128xf32, #tpu.memory_space<any>> -> memref<1x8x128xf32, #tpu.memory_space<any>>
      %226 = tpu.memref_squeeze %225 : memref<1x8x128xf32, #tpu.memory_space<any>> -> memref<8x128xf32, #tpu.memory_space<any>>
      %c0_i32_157 = arith.constant 0 : i32
      %c0_i32_158 = arith.constant 0 : i32
      %227 = tpu.memref_slice %arg3[%c0_i32_154, %c0_i32_157, %c0_i32_158] : memref<8x8x128xf32, #tpu.memory_space<any>> -> memref<1x8x128xf32, #tpu.memory_space<any>>
      %228 = tpu.memref_squeeze %227 : memref<1x8x128xf32, #tpu.memory_space<any>> -> memref<8x128xf32, #tpu.memory_space<any>>
      %229 = tpu.memref_slice %arg4[%11] : memref<8x!tpu.dma_semaphore, #tpu.memory_space<semaphore_mem>> -> memref<1x!tpu.dma_semaphore, #tpu.memory_space<semaphore_mem>>
      %230 = tpu.memref_squeeze %229 : memref<1x!tpu.dma_semaphore, #tpu.memory_space<semaphore_mem>> -> memref<!tpu.dma_semaphore, #tpu.memory_space<semaphore_mem>>
      tpu.wait_dma2 semaphore(%230 : memref<!tpu.dma_semaphore, #tpu.memory_space<semaphore_mem>>) src(%226 : memref<8x128xf32, #tpu.memory_space<any>>) dst(%228 : memref<8x128xf32, #tpu.memory_space<any>>)
    } else {
    }
    %c0_i32_7 = arith.constant 0 : i32
    %c0_i32_8 = arith.constant 0 : i32
    %17 = tpu.memref_slice %arg2[%13, %c0_i32_7, %c0_i32_8] : memref<8x8x128xf32, #tpu.memory_space<any>> -> memref<1x8x128xf32, #tpu.memory_space<any>>
    %18 = tpu.memref_squeeze %17 : memref<1x8x128xf32, #tpu.memory_space<any>> -> memref<8x128xf32, #tpu.memory_space<any>>
    %c0_i32_9 = arith.constant 0 : i32
    %c0_i32_10 = arith.constant 0 : i32
    %19 = tpu.memref_slice %arg3[%1, %c0_i32_9, %c0_i32_10] : memref<8x8x128xf32, #tpu.memory_space<any>> -> memref<1x8x128xf32, #tpu.memory_space<any>>
    %20 = tpu.memref_squeeze %19 : memref<1x8x128xf32, #tpu.memory_space<any>> -> memref<8x128xf32, #tpu.memory_space<any>>
    %21 = tpu.memref_slice %arg4[%11] : memref<8x!tpu.dma_semaphore, #tpu.memory_space<semaphore_mem>> -> memref<1x!tpu.dma_semaphore, #tpu.memory_space<semaphore_mem>>
    %22 = tpu.memref_squeeze %21 : memref<1x!tpu.dma_semaphore, #tpu.memory_space<semaphore_mem>> -> memref<!tpu.dma_semaphore, #tpu.memory_space<semaphore_mem>>
    tpu.enqueue_dma source(%18 : memref<8x128xf32, #tpu.memory_space<any>>) target(%20 : memref<8x128xf32, #tpu.memory_space<any>>) target_semaphore(%22 : memref<!tpu.dma_semaphore, #tpu.memory_space<semaphore_mem>>)
    %c1_i32_11 = arith.constant 1 : i32
    %23 = arith.addi %0, %c1_i32_11 : i32
    %c8_i32_12 = arith.constant 8 : i32
    %c0_i32_13 = arith.constant 0 : i32
    %24 = arith.cmpi eq, %c8_i32_12, %c0_i32_13 : i32
    %c1_i32_14 = arith.constant 1 : i32
    %25 = arith.select %24, %c1_i32_14, %c8_i32_12 : i32
    %26 = arith.remsi %c1_i32_11, %25 : i32
    %c0_i32_15 = arith.constant 0 : i32
    %27 = arith.cmpi ne, %26, %c0_i32_15 : i32
    %c0_i32_16 = arith.constant 0 : i32
    %28 = arith.cmpi slt, %26, %c0_i32_16 : i32
    %c0_i32_17 = arith.constant 0 : i32
    %29 = arith.cmpi slt, %25, %c0_i32_17 : i32
    %30 = arith.xori %28, %29 : i1
    %31 = arith.andi %30, %27 : i1
    %32 = arith.addi %26, %25 : i32
    %33 = arith.select %31, %32, %26 : i32
    %34 = arith.index_cast %23 : i32 to index
    %35 = memref.load %arg1[%34] : memref<8xi32, #tpu.memory_space<smem>>
    %c8_i32_18 = arith.constant 8 : i32
    %36 = arith.cmpi sge, %c1_i32_11, %c8_i32_18 : i32
    %37 = arith.extui %36 : i1 to i32
    %c0_i32_19 = arith.constant 0 : i32
    %38 = arith.cmpi ne, %37, %c0_i32_19 : i32
    scf.if %38 {
      %c0_i32_153 = arith.constant 0 : i32
      %c0_i32_154 = arith.constant 0 : i32
      %c0_i32_155 = arith.constant 0 : i32
      %c0_i32_156 = arith.constant 0 : i32
      %225 = tpu.memref_slice %arg2[%c0_i32_153, %c0_i32_155, %c0_i32_156] : memref<8x8x128xf32, #tpu.memory_space<any>> -> memref<1x8x128xf32, #tpu.memory_space<any>>
      %226 = tpu.memref_squeeze %225 : memref<1x8x128xf32, #tpu.memory_space<any>> -> memref<8x128xf32, #tpu.memory_space<any>>
      %c0_i32_157 = arith.constant 0 : i32
      %c0_i32_158 = arith.constant 0 : i32
      %227 = tpu.memref_slice %arg3[%c0_i32_154, %c0_i32_157, %c0_i32_158] : memref<8x8x128xf32, #tpu.memory_space<any>> -> memref<1x8x128xf32, #tpu.memory_space<any>>
      %228 = tpu.memref_squeeze %227 : memref<1x8x128xf32, #tpu.memory_space<any>> -> memref<8x128xf32, #tpu.memory_space<any>>
      %229 = tpu.memref_slice %arg4[%33] : memref<8x!tpu.dma_semaphore, #tpu.memory_space<semaphore_mem>> -> memref<1x!tpu.dma_semaphore, #tpu.memory_space<semaphore_mem>>
      %230 = tpu.memref_squeeze %229 : memref<1x!tpu.dma_semaphore, #tpu.memory_space<semaphore_mem>> -> memref<!tpu.dma_semaphore, #tpu.memory_space<semaphore_mem>>
      tpu.wait_dma2 semaphore(%230 : memref<!tpu.dma_semaphore, #tpu.memory_space<semaphore_mem>>) src(%226 : memref<8x128xf32, #tpu.memory_space<any>>) dst(%228 : memref<8x128xf32, #tpu.memory_space<any>>)
    } else {
    }
    %c0_i32_20 = arith.constant 0 : i32
    %c0_i32_21 = arith.constant 0 : i32
    %39 = tpu.memref_slice %arg2[%35, %c0_i32_20, %c0_i32_21] : memref<8x8x128xf32, #tpu.memory_space<any>> -> memref<1x8x128xf32, #tpu.memory_space<any>>
    %40 = tpu.memref_squeeze %39 : memref<1x8x128xf32, #tpu.memory_space<any>> -> memref<8x128xf32, #tpu.memory_space<any>>
    %c0_i32_22 = arith.constant 0 : i32
    %c0_i32_23 = arith.constant 0 : i32
    %41 = tpu.memref_slice %arg3[%23, %c0_i32_22, %c0_i32_23] : memref<8x8x128xf32, #tpu.memory_space<any>> -> memref<1x8x128xf32, #tpu.memory_space<any>>
    %42 = tpu.memref_squeeze %41 : memref<1x8x128xf32, #tpu.memory_space<any>> -> memref<8x128xf32, #tpu.memory_space<any>>
    %43 = tpu.memref_slice %arg4[%33] : memref<8x!tpu.dma_semaphore, #tpu.memory_space<semaphore_mem>> -> memref<1x!tpu.dma_semaphore, #tpu.memory_space<semaphore_mem>>
    %44 = tpu.memref_squeeze %43 : memref<1x!tpu.dma_semaphore, #tpu.memory_space<semaphore_mem>> -> memref<!tpu.dma_semaphore, #tpu.memory_space<semaphore_mem>>
    tpu.enqueue_dma source(%40 : memref<8x128xf32, #tpu.memory_space<any>>) target(%42 : memref<8x128xf32, #tpu.memory_space<any>>) target_semaphore(%44 : memref<!tpu.dma_semaphore, #tpu.memory_space<semaphore_mem>>)
    %c2_i32 = arith.constant 2 : i32
    %45 = arith.addi %0, %c2_i32 : i32
    %c8_i32_24 = arith.constant 8 : i32
    %c0_i32_25 = arith.constant 0 : i32
    %46 = arith.cmpi eq, %c8_i32_24, %c0_i32_25 : i32
    %c1_i32_26 = arith.constant 1 : i32
    %47 = arith.select %46, %c1_i32_26, %c8_i32_24 : i32
    %48 = arith.remsi %c2_i32, %47 : i32
    %c0_i32_27 = arith.constant 0 : i32
    %49 = arith.cmpi ne, %48, %c0_i32_27 : i32
    %c0_i32_28 = arith.constant 0 : i32
    %50 = arith.cmpi slt, %48, %c0_i32_28 : i32
    %c0_i32_29 = arith.constant 0 : i32
    %51 = arith.cmpi slt, %47, %c0_i32_29 : i32
    %52 = arith.xori %50, %51 : i1
    %53 = arith.andi %52, %49 : i1
    %54 = arith.addi %48, %47 : i32
    %55 = arith.select %53, %54, %48 : i32
    %56 = arith.index_cast %45 : i32 to index
    %57 = memref.load %arg1[%56] : memref<8xi32, #tpu.memory_space<smem>>
    %c8_i32_30 = arith.constant 8 : i32
    %58 = arith.cmpi sge, %c2_i32, %c8_i32_30 : i32
    %59 = arith.extui %58 : i1 to i32
    %c0_i32_31 = arith.constant 0 : i32
    %60 = arith.cmpi ne, %59, %c0_i32_31 : i32
    scf.if %60 {
      %c0_i32_153 = arith.constant 0 : i32
      %c0_i32_154 = arith.constant 0 : i32
      %c0_i32_155 = arith.constant 0 : i32
      %c0_i32_156 = arith.constant 0 : i32
      %225 = tpu.memref_slice %arg2[%c0_i32_153, %c0_i32_155, %c0_i32_156] : memref<8x8x128xf32, #tpu.memory_space<any>> -> memref<1x8x128xf32, #tpu.memory_space<any>>
      %226 = tpu.memref_squeeze %225 : memref<1x8x128xf32, #tpu.memory_space<any>> -> memref<8x128xf32, #tpu.memory_space<any>>
      %c0_i32_157 = arith.constant 0 : i32
      %c0_i32_158 = arith.constant 0 : i32
      %227 = tpu.memref_slice %arg3[%c0_i32_154, %c0_i32_157, %c0_i32_158] : memref<8x8x128xf32, #tpu.memory_space<any>> -> memref<1x8x128xf32, #tpu.memory_space<any>>
      %228 = tpu.memref_squeeze %227 : memref<1x8x128xf32, #tpu.memory_space<any>> -> memref<8x128xf32, #tpu.memory_space<any>>
      %229 = tpu.memref_slice %arg4[%55] : memref<8x!tpu.dma_semaphore, #tpu.memory_space<semaphore_mem>> -> memref<1x!tpu.dma_semaphore, #tpu.memory_space<semaphore_mem>>
      %230 = tpu.memref_squeeze %229 : memref<1x!tpu.dma_semaphore, #tpu.memory_space<semaphore_mem>> -> memref<!tpu.dma_semaphore, #tpu.memory_space<semaphore_mem>>
      tpu.wait_dma2 semaphore(%230 : memref<!tpu.dma_semaphore, #tpu.memory_space<semaphore_mem>>) src(%226 : memref<8x128xf32, #tpu.memory_space<any>>) dst(%228 : memref<8x128xf32, #tpu.memory_space<any>>)
    } else {
    }
    %c0_i32_32 = arith.constant 0 : i32
    %c0_i32_33 = arith.constant 0 : i32
    %61 = tpu.memref_slice %arg2[%57, %c0_i32_32, %c0_i32_33] : memref<8x8x128xf32, #tpu.memory_space<any>> -> memref<1x8x128xf32, #tpu.memory_space<any>>
    %62 = tpu.memref_squeeze %61 : memref<1x8x128xf32, #tpu.memory_space<any>> -> memref<8x128xf32, #tpu.memory_space<any>>
    %c0_i32_34 = arith.constant 0 : i32
    %c0_i32_35 = arith.constant 0 : i32
    %63 = tpu.memref_slice %arg3[%45, %c0_i32_34, %c0_i32_35] : memref<8x8x128xf32, #tpu.memory_space<any>> -> memref<1x8x128xf32, #tpu.memory_space<any>>
    %64 = tpu.memref_squeeze %63 : memref<1x8x128xf32, #tpu.memory_space<any>> -> memref<8x128xf32, #tpu.memory_space<any>>
    %65 = tpu.memref_slice %arg4[%55] : memref<8x!tpu.dma_semaphore, #tpu.memory_space<semaphore_mem>> -> memref<1x!tpu.dma_semaphore, #tpu.memory_space<semaphore_mem>>
    %66 = tpu.memref_squeeze %65 : memref<1x!tpu.dma_semaphore, #tpu.memory_space<semaphore_mem>> -> memref<!tpu.dma_semaphore, #tpu.memory_space<semaphore_mem>>
    tpu.enqueue_dma source(%62 : memref<8x128xf32, #tpu.memory_space<any>>) target(%64 : memref<8x128xf32, #tpu.memory_space<any>>) target_semaphore(%66 : memref<!tpu.dma_semaphore, #tpu.memory_space<semaphore_mem>>)
    %c3_i32 = arith.constant 3 : i32
    %67 = arith.addi %0, %c3_i32 : i32
    %c8_i32_36 = arith.constant 8 : i32
    %c0_i32_37 = arith.constant 0 : i32
    %68 = arith.cmpi eq, %c8_i32_36, %c0_i32_37 : i32
    %c1_i32_38 = arith.constant 1 : i32
    %69 = arith.select %68, %c1_i32_38, %c8_i32_36 : i32
    %70 = arith.remsi %c3_i32, %69 : i32
    %c0_i32_39 = arith.constant 0 : i32
    %71 = arith.cmpi ne, %70, %c0_i32_39 : i32
    %c0_i32_40 = arith.constant 0 : i32
    %72 = arith.cmpi slt, %70, %c0_i32_40 : i32
    %c0_i32_41 = arith.constant 0 : i32
    %73 = arith.cmpi slt, %69, %c0_i32_41 : i32
    %74 = arith.xori %72, %73 : i1
    %75 = arith.andi %74, %71 : i1
    %76 = arith.addi %70, %69 : i32
    %77 = arith.select %75, %76, %70 : i32
    %78 = arith.index_cast %67 : i32 to index
    %79 = memref.load %arg1[%78] : memref<8xi32, #tpu.memory_space<smem>>
    %c8_i32_42 = arith.constant 8 : i32
    %80 = arith.cmpi sge, %c3_i32, %c8_i32_42 : i32
    %81 = arith.extui %80 : i1 to i32
    %c0_i32_43 = arith.constant 0 : i32
    %82 = arith.cmpi ne, %81, %c0_i32_43 : i32
    scf.if %82 {
      %c0_i32_153 = arith.constant 0 : i32
      %c0_i32_154 = arith.constant 0 : i32
      %c0_i32_155 = arith.constant 0 : i32
      %c0_i32_156 = arith.constant 0 : i32
      %225 = tpu.memref_slice %arg2[%c0_i32_153, %c0_i32_155, %c0_i32_156] : memref<8x8x128xf32, #tpu.memory_space<any>> -> memref<1x8x128xf32, #tpu.memory_space<any>>
      %226 = tpu.memref_squeeze %225 : memref<1x8x128xf32, #tpu.memory_space<any>> -> memref<8x128xf32, #tpu.memory_space<any>>
      %c0_i32_157 = arith.constant 0 : i32
      %c0_i32_158 = arith.constant 0 : i32
      %227 = tpu.memref_slice %arg3[%c0_i32_154, %c0_i32_157, %c0_i32_158] : memref<8x8x128xf32, #tpu.memory_space<any>> -> memref<1x8x128xf32, #tpu.memory_space<any>>
      %228 = tpu.memref_squeeze %227 : memref<1x8x128xf32, #tpu.memory_space<any>> -> memref<8x128xf32, #tpu.memory_space<any>>
      %229 = tpu.memref_slice %arg4[%77] : memref<8x!tpu.dma_semaphore, #tpu.memory_space<semaphore_mem>> -> memref<1x!tpu.dma_semaphore, #tpu.memory_space<semaphore_mem>>
      %230 = tpu.memref_squeeze %229 : memref<1x!tpu.dma_semaphore, #tpu.memory_space<semaphore_mem>> -> memref<!tpu.dma_semaphore, #tpu.memory_space<semaphore_mem>>
      tpu.wait_dma2 semaphore(%230 : memref<!tpu.dma_semaphore, #tpu.memory_space<semaphore_mem>>) src(%226 : memref<8x128xf32, #tpu.memory_space<any>>) dst(%228 : memref<8x128xf32, #tpu.memory_space<any>>)
    } else {
    }
    %c0_i32_44 = arith.constant 0 : i32
    %c0_i32_45 = arith.constant 0 : i32
    %83 = tpu.memref_slice %arg2[%79, %c0_i32_44, %c0_i32_45] : memref<8x8x128xf32, #tpu.memory_space<any>> -> memref<1x8x128xf32, #tpu.memory_space<any>>
    %84 = tpu.memref_squeeze %83 : memref<1x8x128xf32, #tpu.memory_space<any>> -> memref<8x128xf32, #tpu.memory_space<any>>
    %c0_i32_46 = arith.constant 0 : i32
    %c0_i32_47 = arith.constant 0 : i32
    %85 = tpu.memref_slice %arg3[%67, %c0_i32_46, %c0_i32_47] : memref<8x8x128xf32, #tpu.memory_space<any>> -> memref<1x8x128xf32, #tpu.memory_space<any>>
    %86 = tpu.memref_squeeze %85 : memref<1x8x128xf32, #tpu.memory_space<any>> -> memref<8x128xf32, #tpu.memory_space<any>>
    %87 = tpu.memref_slice %arg4[%77] : memref<8x!tpu.dma_semaphore, #tpu.memory_space<semaphore_mem>> -> memref<1x!tpu.dma_semaphore, #tpu.memory_space<semaphore_mem>>
    %88 = tpu.memref_squeeze %87 : memref<1x!tpu.dma_semaphore, #tpu.memory_space<semaphore_mem>> -> memref<!tpu.dma_semaphore, #tpu.memory_space<semaphore_mem>>
    tpu.enqueue_dma source(%84 : memref<8x128xf32, #tpu.memory_space<any>>) target(%86 : memref<8x128xf32, #tpu.memory_space<any>>) target_semaphore(%88 : memref<!tpu.dma_semaphore, #tpu.memory_space<semaphore_mem>>)
    %c4_i32 = arith.constant 4 : i32
    %89 = arith.addi %0, %c4_i32 : i32
    %c8_i32_48 = arith.constant 8 : i32
    %c0_i32_49 = arith.constant 0 : i32
    %90 = arith.cmpi eq, %c8_i32_48, %c0_i32_49 : i32
    %c1_i32_50 = arith.constant 1 : i32
    %91 = arith.select %90, %c1_i32_50, %c8_i32_48 : i32
    %92 = arith.remsi %c4_i32, %91 : i32
    %c0_i32_51 = arith.constant 0 : i32
    %93 = arith.cmpi ne, %92, %c0_i32_51 : i32
    %c0_i32_52 = arith.constant 0 : i32
    %94 = arith.cmpi slt, %92, %c0_i32_52 : i32
    %c0_i32_53 = arith.constant 0 : i32
    %95 = arith.cmpi slt, %91, %c0_i32_53 : i32
    %96 = arith.xori %94, %95 : i1
    %97 = arith.andi %96, %93 : i1
    %98 = arith.addi %92, %91 : i32
    %99 = arith.select %97, %98, %92 : i32
    %100 = arith.index_cast %89 : i32 to index
    %101 = memref.load %arg1[%100] : memref<8xi32, #tpu.memory_space<smem>>
    %c8_i32_54 = arith.constant 8 : i32
    %102 = arith.cmpi sge, %c4_i32, %c8_i32_54 : i32
    %103 = arith.extui %102 : i1 to i32
    %c0_i32_55 = arith.constant 0 : i32
    %104 = arith.cmpi ne, %103, %c0_i32_55 : i32
    scf.if %104 {
      %c0_i32_153 = arith.constant 0 : i32
      %c0_i32_154 = arith.constant 0 : i32
      %c0_i32_155 = arith.constant 0 : i32
      %c0_i32_156 = arith.constant 0 : i32
      %225 = tpu.memref_slice %arg2[%c0_i32_153, %c0_i32_155, %c0_i32_156] : memref<8x8x128xf32, #tpu.memory_space<any>> -> memref<1x8x128xf32, #tpu.memory_space<any>>
      %226 = tpu.memref_squeeze %225 : memref<1x8x128xf32, #tpu.memory_space<any>> -> memref<8x128xf32, #tpu.memory_space<any>>
      %c0_i32_157 = arith.constant 0 : i32
      %c0_i32_158 = arith.constant 0 : i32
      %227 = tpu.memref_slice %arg3[%c0_i32_154, %c0_i32_157, %c0_i32_158] : memref<8x8x128xf32, #tpu.memory_space<any>> -> memref<1x8x128xf32, #tpu.memory_space<any>>
      %228 = tpu.memref_squeeze %227 : memref<1x8x128xf32, #tpu.memory_space<any>> -> memref<8x128xf32, #tpu.memory_space<any>>
      %229 = tpu.memref_slice %arg4[%99] : memref<8x!tpu.dma_semaphore, #tpu.memory_space<semaphore_mem>> -> memref<1x!tpu.dma_semaphore, #tpu.memory_space<semaphore_mem>>
      %230 = tpu.memref_squeeze %229 : memref<1x!tpu.dma_semaphore, #tpu.memory_space<semaphore_mem>> -> memref<!tpu.dma_semaphore, #tpu.memory_space<semaphore_mem>>
      tpu.wait_dma2 semaphore(%230 : memref<!tpu.dma_semaphore, #tpu.memory_space<semaphore_mem>>) src(%226 : memref<8x128xf32, #tpu.memory_space<any>>) dst(%228 : memref<8x128xf32, #tpu.memory_space<any>>)
    } else {
    }
    %c0_i32_56 = arith.constant 0 : i32
    %c0_i32_57 = arith.constant 0 : i32
    %105 = tpu.memref_slice %arg2[%101, %c0_i32_56, %c0_i32_57] : memref<8x8x128xf32, #tpu.memory_space<any>> -> memref<1x8x128xf32, #tpu.memory_space<any>>
    %106 = tpu.memref_squeeze %105 : memref<1x8x128xf32, #tpu.memory_space<any>> -> memref<8x128xf32, #tpu.memory_space<any>>
    %c0_i32_58 = arith.constant 0 : i32
    %c0_i32_59 = arith.constant 0 : i32
    %107 = tpu.memref_slice %arg3[%89, %c0_i32_58, %c0_i32_59] : memref<8x8x128xf32, #tpu.memory_space<any>> -> memref<1x8x128xf32, #tpu.memory_space<any>>
    %108 = tpu.memref_squeeze %107 : memref<1x8x128xf32, #tpu.memory_space<any>> -> memref<8x128xf32, #tpu.memory_space<any>>
    %109 = tpu.memref_slice %arg4[%99] : memref<8x!tpu.dma_semaphore, #tpu.memory_space<semaphore_mem>> -> memref<1x!tpu.dma_semaphore, #tpu.memory_space<semaphore_mem>>
    %110 = tpu.memref_squeeze %109 : memref<1x!tpu.dma_semaphore, #tpu.memory_space<semaphore_mem>> -> memref<!tpu.dma_semaphore, #tpu.memory_space<semaphore_mem>>
    tpu.enqueue_dma source(%106 : memref<8x128xf32, #tpu.memory_space<any>>) target(%108 : memref<8x128xf32, #tpu.memory_space<any>>) target_semaphore(%110 : memref<!tpu.dma_semaphore, #tpu.memory_space<semaphore_mem>>)
    %c5_i32 = arith.constant 5 : i32
    %111 = arith.addi %0, %c5_i32 : i32
    %c8_i32_60 = arith.constant 8 : i32
    %c0_i32_61 = arith.constant 0 : i32
    %112 = arith.cmpi eq, %c8_i32_60, %c0_i32_61 : i32
    %c1_i32_62 = arith.constant 1 : i32
    %113 = arith.select %112, %c1_i32_62, %c8_i32_60 : i32
    %114 = arith.remsi %c5_i32, %113 : i32
    %c0_i32_63 = arith.constant 0 : i32
    %115 = arith.cmpi ne, %114, %c0_i32_63 : i32
    %c0_i32_64 = arith.constant 0 : i32
    %116 = arith.cmpi slt, %114, %c0_i32_64 : i32
    %c0_i32_65 = arith.constant 0 : i32
    %117 = arith.cmpi slt, %113, %c0_i32_65 : i32
    %118 = arith.xori %116, %117 : i1
    %119 = arith.andi %118, %115 : i1
    %120 = arith.addi %114, %113 : i32
    %121 = arith.select %119, %120, %114 : i32
    %122 = arith.index_cast %111 : i32 to index
    %123 = memref.load %arg1[%122] : memref<8xi32, #tpu.memory_space<smem>>
    %c8_i32_66 = arith.constant 8 : i32
    %124 = arith.cmpi sge, %c5_i32, %c8_i32_66 : i32
    %125 = arith.extui %124 : i1 to i32
    %c0_i32_67 = arith.constant 0 : i32
    %126 = arith.cmpi ne, %125, %c0_i32_67 : i32
    scf.if %126 {
      %c0_i32_153 = arith.constant 0 : i32
      %c0_i32_154 = arith.constant 0 : i32
      %c0_i32_155 = arith.constant 0 : i32
      %c0_i32_156 = arith.constant 0 : i32
      %225 = tpu.memref_slice %arg2[%c0_i32_153, %c0_i32_155, %c0_i32_156] : memref<8x8x128xf32, #tpu.memory_space<any>> -> memref<1x8x128xf32, #tpu.memory_space<any>>
      %226 = tpu.memref_squeeze %225 : memref<1x8x128xf32, #tpu.memory_space<any>> -> memref<8x128xf32, #tpu.memory_space<any>>
      %c0_i32_157 = arith.constant 0 : i32
      %c0_i32_158 = arith.constant 0 : i32
      %227 = tpu.memref_slice %arg3[%c0_i32_154, %c0_i32_157, %c0_i32_158] : memref<8x8x128xf32, #tpu.memory_space<any>> -> memref<1x8x128xf32, #tpu.memory_space<any>>
      %228 = tpu.memref_squeeze %227 : memref<1x8x128xf32, #tpu.memory_space<any>> -> memref<8x128xf32, #tpu.memory_space<any>>
      %229 = tpu.memref_slice %arg4[%121] : memref<8x!tpu.dma_semaphore, #tpu.memory_space<semaphore_mem>> -> memref<1x!tpu.dma_semaphore, #tpu.memory_space<semaphore_mem>>
      %230 = tpu.memref_squeeze %229 : memref<1x!tpu.dma_semaphore, #tpu.memory_space<semaphore_mem>> -> memref<!tpu.dma_semaphore, #tpu.memory_space<semaphore_mem>>
      tpu.wait_dma2 semaphore(%230 : memref<!tpu.dma_semaphore, #tpu.memory_space<semaphore_mem>>) src(%226 : memref<8x128xf32, #tpu.memory_space<any>>) dst(%228 : memref<8x128xf32, #tpu.memory_space<any>>)
    } else {
    }
    %c0_i32_68 = arith.constant 0 : i32
    %c0_i32_69 = arith.constant 0 : i32
    %127 = tpu.memref_slice %arg2[%123, %c0_i32_68, %c0_i32_69] : memref<8x8x128xf32, #tpu.memory_space<any>> -> memref<1x8x128xf32, #tpu.memory_space<any>>
    %128 = tpu.memref_squeeze %127 : memref<1x8x128xf32, #tpu.memory_space<any>> -> memref<8x128xf32, #tpu.memory_space<any>>
    %c0_i32_70 = arith.constant 0 : i32
    %c0_i32_71 = arith.constant 0 : i32
    %129 = tpu.memref_slice %arg3[%111, %c0_i32_70, %c0_i32_71] : memref<8x8x128xf32, #tpu.memory_space<any>> -> memref<1x8x128xf32, #tpu.memory_space<any>>
    %130 = tpu.memref_squeeze %129 : memref<1x8x128xf32, #tpu.memory_space<any>> -> memref<8x128xf32, #tpu.memory_space<any>>
    %131 = tpu.memref_slice %arg4[%121] : memref<8x!tpu.dma_semaphore, #tpu.memory_space<semaphore_mem>> -> memref<1x!tpu.dma_semaphore, #tpu.memory_space<semaphore_mem>>
    %132 = tpu.memref_squeeze %131 : memref<1x!tpu.dma_semaphore, #tpu.memory_space<semaphore_mem>> -> memref<!tpu.dma_semaphore, #tpu.memory_space<semaphore_mem>>
    tpu.enqueue_dma source(%128 : memref<8x128xf32, #tpu.memory_space<any>>) target(%130 : memref<8x128xf32, #tpu.memory_space<any>>) target_semaphore(%132 : memref<!tpu.dma_semaphore, #tpu.memory_space<semaphore_mem>>)
    %c6_i32 = arith.constant 6 : i32
    %133 = arith.addi %0, %c6_i32 : i32
    %c8_i32_72 = arith.constant 8 : i32
    %c0_i32_73 = arith.constant 0 : i32
    %134 = arith.cmpi eq, %c8_i32_72, %c0_i32_73 : i32
    %c1_i32_74 = arith.constant 1 : i32
    %135 = arith.select %134, %c1_i32_74, %c8_i32_72 : i32
    %136 = arith.remsi %c6_i32, %135 : i32
    %c0_i32_75 = arith.constant 0 : i32
    %137 = arith.cmpi ne, %136, %c0_i32_75 : i32
    %c0_i32_76 = arith.constant 0 : i32
    %138 = arith.cmpi slt, %136, %c0_i32_76 : i32
    %c0_i32_77 = arith.constant 0 : i32
    %139 = arith.cmpi slt, %135, %c0_i32_77 : i32
    %140 = arith.xori %138, %139 : i1
    %141 = arith.andi %140, %137 : i1
    %142 = arith.addi %136, %135 : i32
    %143 = arith.select %141, %142, %136 : i32
    %144 = arith.index_cast %133 : i32 to index
    %145 = memref.load %arg1[%144] : memref<8xi32, #tpu.memory_space<smem>>
    %c8_i32_78 = arith.constant 8 : i32
    %146 = arith.cmpi sge, %c6_i32, %c8_i32_78 : i32
    %147 = arith.extui %146 : i1 to i32
    %c0_i32_79 = arith.constant 0 : i32
    %148 = arith.cmpi ne, %147, %c0_i32_79 : i32
    scf.if %148 {
      %c0_i32_153 = arith.constant 0 : i32
      %c0_i32_154 = arith.constant 0 : i32
      %c0_i32_155 = arith.constant 0 : i32
      %c0_i32_156 = arith.constant 0 : i32
      %225 = tpu.memref_slice %arg2[%c0_i32_153, %c0_i32_155, %c0_i32_156] : memref<8x8x128xf32, #tpu.memory_space<any>> -> memref<1x8x128xf32, #tpu.memory_space<any>>
      %226 = tpu.memref_squeeze %225 : memref<1x8x128xf32, #tpu.memory_space<any>> -> memref<8x128xf32, #tpu.memory_space<any>>
      %c0_i32_157 = arith.constant 0 : i32
      %c0_i32_158 = arith.constant 0 : i32
      %227 = tpu.memref_slice %arg3[%c0_i32_154, %c0_i32_157, %c0_i32_158] : memref<8x8x128xf32, #tpu.memory_space<any>> -> memref<1x8x128xf32, #tpu.memory_space<any>>
      %228 = tpu.memref_squeeze %227 : memref<1x8x128xf32, #tpu.memory_space<any>> -> memref<8x128xf32, #tpu.memory_space<any>>
      %229 = tpu.memref_slice %arg4[%143] : memref<8x!tpu.dma_semaphore, #tpu.memory_space<semaphore_mem>> -> memref<1x!tpu.dma_semaphore, #tpu.memory_space<semaphore_mem>>
      %230 = tpu.memref_squeeze %229 : memref<1x!tpu.dma_semaphore, #tpu.memory_space<semaphore_mem>> -> memref<!tpu.dma_semaphore, #tpu.memory_space<semaphore_mem>>
      tpu.wait_dma2 semaphore(%230 : memref<!tpu.dma_semaphore, #tpu.memory_space<semaphore_mem>>) src(%226 : memref<8x128xf32, #tpu.memory_space<any>>) dst(%228 : memref<8x128xf32, #tpu.memory_space<any>>)
    } else {
    }
    %c0_i32_80 = arith.constant 0 : i32
    %c0_i32_81 = arith.constant 0 : i32
    %149 = tpu.memref_slice %arg2[%145, %c0_i32_80, %c0_i32_81] : memref<8x8x128xf32, #tpu.memory_space<any>> -> memref<1x8x128xf32, #tpu.memory_space<any>>
    %150 = tpu.memref_squeeze %149 : memref<1x8x128xf32, #tpu.memory_space<any>> -> memref<8x128xf32, #tpu.memory_space<any>>
    %c0_i32_82 = arith.constant 0 : i32
    %c0_i32_83 = arith.constant 0 : i32
    %151 = tpu.memref_slice %arg3[%133, %c0_i32_82, %c0_i32_83] : memref<8x8x128xf32, #tpu.memory_space<any>> -> memref<1x8x128xf32, #tpu.memory_space<any>>
    %152 = tpu.memref_squeeze %151 : memref<1x8x128xf32, #tpu.memory_space<any>> -> memref<8x128xf32, #tpu.memory_space<any>>
    %153 = tpu.memref_slice %arg4[%143] : memref<8x!tpu.dma_semaphore, #tpu.memory_space<semaphore_mem>> -> memref<1x!tpu.dma_semaphore, #tpu.memory_space<semaphore_mem>>
    %154 = tpu.memref_squeeze %153 : memref<1x!tpu.dma_semaphore, #tpu.memory_space<semaphore_mem>> -> memref<!tpu.dma_semaphore, #tpu.memory_space<semaphore_mem>>
    tpu.enqueue_dma source(%150 : memref<8x128xf32, #tpu.memory_space<any>>) target(%152 : memref<8x128xf32, #tpu.memory_space<any>>) target_semaphore(%154 : memref<!tpu.dma_semaphore, #tpu.memory_space<semaphore_mem>>)
    %c7_i32 = arith.constant 7 : i32
    %155 = arith.addi %0, %c7_i32 : i32
    %c8_i32_84 = arith.constant 8 : i32
    %c0_i32_85 = arith.constant 0 : i32
    %156 = arith.cmpi eq, %c8_i32_84, %c0_i32_85 : i32
    %c1_i32_86 = arith.constant 1 : i32
    %157 = arith.select %156, %c1_i32_86, %c8_i32_84 : i32
    %158 = arith.remsi %c7_i32, %157 : i32
    %c0_i32_87 = arith.constant 0 : i32
    %159 = arith.cmpi ne, %158, %c0_i32_87 : i32
    %c0_i32_88 = arith.constant 0 : i32
    %160 = arith.cmpi slt, %158, %c0_i32_88 : i32
    %c0_i32_89 = arith.constant 0 : i32
    %161 = arith.cmpi slt, %157, %c0_i32_89 : i32
    %162 = arith.xori %160, %161 : i1
    %163 = arith.andi %162, %159 : i1
    %164 = arith.addi %158, %157 : i32
    %165 = arith.select %163, %164, %158 : i32
    %166 = arith.index_cast %155 : i32 to index
    %167 = memref.load %arg1[%166] : memref<8xi32, #tpu.memory_space<smem>>
    %c8_i32_90 = arith.constant 8 : i32
    %168 = arith.cmpi sge, %c7_i32, %c8_i32_90 : i32
    %169 = arith.extui %168 : i1 to i32
    %c0_i32_91 = arith.constant 0 : i32
    %170 = arith.cmpi ne, %169, %c0_i32_91 : i32
    scf.if %170 {
      %c0_i32_153 = arith.constant 0 : i32
      %c0_i32_154 = arith.constant 0 : i32
      %c0_i32_155 = arith.constant 0 : i32
      %c0_i32_156 = arith.constant 0 : i32
      %225 = tpu.memref_slice %arg2[%c0_i32_153, %c0_i32_155, %c0_i32_156] : memref<8x8x128xf32, #tpu.memory_space<any>> -> memref<1x8x128xf32, #tpu.memory_space<any>>
      %226 = tpu.memref_squeeze %225 : memref<1x8x128xf32, #tpu.memory_space<any>> -> memref<8x128xf32, #tpu.memory_space<any>>
      %c0_i32_157 = arith.constant 0 : i32
      %c0_i32_158 = arith.constant 0 : i32
      %227 = tpu.memref_slice %arg3[%c0_i32_154, %c0_i32_157, %c0_i32_158] : memref<8x8x128xf32, #tpu.memory_space<any>> -> memref<1x8x128xf32, #tpu.memory_space<any>>
      %228 = tpu.memref_squeeze %227 : memref<1x8x128xf32, #tpu.memory_space<any>> -> memref<8x128xf32, #tpu.memory_space<any>>
      %229 = tpu.memref_slice %arg4[%165] : memref<8x!tpu.dma_semaphore, #tpu.memory_space<semaphore_mem>> -> memref<1x!tpu.dma_semaphore, #tpu.memory_space<semaphore_mem>>
      %230 = tpu.memref_squeeze %229 : memref<1x!tpu.dma_semaphore, #tpu.memory_space<semaphore_mem>> -> memref<!tpu.dma_semaphore, #tpu.memory_space<semaphore_mem>>
      tpu.wait_dma2 semaphore(%230 : memref<!tpu.dma_semaphore, #tpu.memory_space<semaphore_mem>>) src(%226 : memref<8x128xf32, #tpu.memory_space<any>>) dst(%228 : memref<8x128xf32, #tpu.memory_space<any>>)
    } else {
    }
    %c0_i32_92 = arith.constant 0 : i32
    %c0_i32_93 = arith.constant 0 : i32
    %171 = tpu.memref_slice %arg2[%167, %c0_i32_92, %c0_i32_93] : memref<8x8x128xf32, #tpu.memory_space<any>> -> memref<1x8x128xf32, #tpu.memory_space<any>>
    %172 = tpu.memref_squeeze %171 : memref<1x8x128xf32, #tpu.memory_space<any>> -> memref<8x128xf32, #tpu.memory_space<any>>
    %c0_i32_94 = arith.constant 0 : i32
    %c0_i32_95 = arith.constant 0 : i32
    %173 = tpu.memref_slice %arg3[%155, %c0_i32_94, %c0_i32_95] : memref<8x8x128xf32, #tpu.memory_space<any>> -> memref<1x8x128xf32, #tpu.memory_space<any>>
    %174 = tpu.memref_squeeze %173 : memref<1x8x128xf32, #tpu.memory_space<any>> -> memref<8x128xf32, #tpu.memory_space<any>>
    %175 = tpu.memref_slice %arg4[%165] : memref<8x!tpu.dma_semaphore, #tpu.memory_space<semaphore_mem>> -> memref<1x!tpu.dma_semaphore, #tpu.memory_space<semaphore_mem>>
    %176 = tpu.memref_squeeze %175 : memref<1x!tpu.dma_semaphore, #tpu.memory_space<semaphore_mem>> -> memref<!tpu.dma_semaphore, #tpu.memory_space<semaphore_mem>>
    tpu.enqueue_dma source(%172 : memref<8x128xf32, #tpu.memory_space<any>>) target(%174 : memref<8x128xf32, #tpu.memory_space<any>>) target_semaphore(%176 : memref<!tpu.dma_semaphore, #tpu.memory_space<semaphore_mem>>)
    %c8_i32_96 = arith.constant 8 : i32
    %c0_i32_97 = arith.constant 0 : i32
    %c0_i32_98 = arith.constant 0 : i32
    %c0_i32_99 = arith.constant 0 : i32
    %c0_i32_100 = arith.constant 0 : i32
    %c0_i32_101 = arith.constant 0 : i32
    %177 = tpu.memref_slice %arg2[%c0_i32_97, %c0_i32_100, %c0_i32_101] : memref<8x8x128xf32, #tpu.memory_space<any>> -> memref<1x8x128xf32, #tpu.memory_space<any>>
    %178 = tpu.memref_squeeze %177 : memref<1x8x128xf32, #tpu.memory_space<any>> -> memref<8x128xf32, #tpu.memory_space<any>>
    %c0_i32_102 = arith.constant 0 : i32
    %c0_i32_103 = arith.constant 0 : i32
    %179 = tpu.memref_slice %arg3[%c0_i32_98, %c0_i32_102, %c0_i32_103] : memref<8x8x128xf32, #tpu.memory_space<any>> -> memref<1x8x128xf32, #tpu.memory_space<any>>
    %180 = tpu.memref_squeeze %179 : memref<1x8x128xf32, #tpu.memory_space<any>> -> memref<8x128xf32, #tpu.memory_space<any>>
    %181 = tpu.memref_slice %arg4[%c0_i32_99] : memref<8x!tpu.dma_semaphore, #tpu.memory_space<semaphore_mem>> -> memref<1x!tpu.dma_semaphore, #tpu.memory_space<semaphore_mem>>
    %182 = tpu.memref_squeeze %181 : memref<1x!tpu.dma_semaphore, #tpu.memory_space<semaphore_mem>> -> memref<!tpu.dma_semaphore, #tpu.memory_space<semaphore_mem>>
    tpu.wait_dma2 semaphore(%182 : memref<!tpu.dma_semaphore, #tpu.memory_space<semaphore_mem>>) src(%178 : memref<8x128xf32, #tpu.memory_space<any>>) dst(%180 : memref<8x128xf32, #tpu.memory_space<any>>)
    %c0_i32_104 = arith.constant 0 : i32
    %c0_i32_105 = arith.constant 0 : i32
    %c1_i32_106 = arith.constant 1 : i32
    %c0_i32_107 = arith.constant 0 : i32
    %c0_i32_108 = arith.constant 0 : i32
    %183 = tpu.memref_slice %arg2[%c0_i32_104, %c0_i32_107, %c0_i32_108] : memref<8x8x128xf32, #tpu.memory_space<any>> -> memref<1x8x128xf32, #tpu.memory_space<any>>
    %184 = tpu.memref_squeeze %183 : memref<1x8x128xf32, #tpu.memory_space<any>> -> memref<8x128xf32, #tpu.memory_space<any>>
    %c0_i32_109 = arith.constant 0 : i32
    %c0_i32_110 = arith.constant 0 : i32
    %185 = tpu.memref_slice %arg3[%c0_i32_105, %c0_i32_109, %c0_i32_110] : memref<8x8x128xf32, #tpu.memory_space<any>> -> memref<1x8x128xf32, #tpu.memory_space<any>>
    %186 = tpu.memref_squeeze %185 : memref<1x8x128xf32, #tpu.memory_space<any>> -> memref<8x128xf32, #tpu.memory_space<any>>
    %187 = tpu.memref_slice %arg4[%c1_i32_106] : memref<8x!tpu.dma_semaphore, #tpu.memory_space<semaphore_mem>> -> memref<1x!tpu.dma_semaphore, #tpu.memory_space<semaphore_mem>>
    %188 = tpu.memref_squeeze %187 : memref<1x!tpu.dma_semaphore, #tpu.memory_space<semaphore_mem>> -> memref<!tpu.dma_semaphore, #tpu.memory_space<semaphore_mem>>
    tpu.wait_dma2 semaphore(%188 : memref<!tpu.dma_semaphore, #tpu.memory_space<semaphore_mem>>) src(%184 : memref<8x128xf32, #tpu.memory_space<any>>) dst(%186 : memref<8x128xf32, #tpu.memory_space<any>>)
    %c0_i32_111 = arith.constant 0 : i32
    %c0_i32_112 = arith.constant 0 : i32
    %c2_i32_113 = arith.constant 2 : i32
    %c0_i32_114 = arith.constant 0 : i32
    %c0_i32_115 = arith.constant 0 : i32
    %189 = tpu.memref_slice %arg2[%c0_i32_111, %c0_i32_114, %c0_i32_115] : memref<8x8x128xf32, #tpu.memory_space<any>> -> memref<1x8x128xf32, #tpu.memory_space<any>>
    %190 = tpu.memref_squeeze %189 : memref<1x8x128xf32, #tpu.memory_space<any>> -> memref<8x128xf32, #tpu.memory_space<any>>
    %c0_i32_116 = arith.constant 0 : i32
    %c0_i32_117 = arith.constant 0 : i32
    %191 = tpu.memref_slice %arg3[%c0_i32_112, %c0_i32_116, %c0_i32_117] : memref<8x8x128xf32, #tpu.memory_space<any>> -> memref<1x8x128xf32, #tpu.memory_space<any>>
    %192 = tpu.memref_squeeze %191 : memref<1x8x128xf32, #tpu.memory_space<any>> -> memref<8x128xf32, #tpu.memory_space<any>>
    %193 = tpu.memref_slice %arg4[%c2_i32_113] : memref<8x!tpu.dma_semaphore, #tpu.memory_space<semaphore_mem>> -> memref<1x!tpu.dma_semaphore, #tpu.memory_space<semaphore_mem>>
    %194 = tpu.memref_squeeze %193 : memref<1x!tpu.dma_semaphore, #tpu.memory_space<semaphore_mem>> -> memref<!tpu.dma_semaphore, #tpu.memory_space<semaphore_mem>>
    tpu.wait_dma2 semaphore(%194 : memref<!tpu.dma_semaphore, #tpu.memory_space<semaphore_mem>>) src(%190 : memref<8x128xf32, #tpu.memory_space<any>>) dst(%192 : memref<8x128xf32, #tpu.memory_space<any>>)
    %c0_i32_118 = arith.constant 0 : i32
    %c0_i32_119 = arith.constant 0 : i32
    %c3_i32_120 = arith.constant 3 : i32
    %c0_i32_121 = arith.constant 0 : i32
    %c0_i32_122 = arith.constant 0 : i32
    %195 = tpu.memref_slice %arg2[%c0_i32_118, %c0_i32_121, %c0_i32_122] : memref<8x8x128xf32, #tpu.memory_space<any>> -> memref<1x8x128xf32, #tpu.memory_space<any>>
    %196 = tpu.memref_squeeze %195 : memref<1x8x128xf32, #tpu.memory_space<any>> -> memref<8x128xf32, #tpu.memory_space<any>>
    %c0_i32_123 = arith.constant 0 : i32
    %c0_i32_124 = arith.constant 0 : i32
    %197 = tpu.memref_slice %arg3[%c0_i32_119, %c0_i32_123, %c0_i32_124] : memref<8x8x128xf32, #tpu.memory_space<any>> -> memref<1x8x128xf32, #tpu.memory_space<any>>
    %198 = tpu.memref_squeeze %197 : memref<1x8x128xf32, #tpu.memory_space<any>> -> memref<8x128xf32, #tpu.memory_space<any>>
    %199 = tpu.memref_slice %arg4[%c3_i32_120] : memref<8x!tpu.dma_semaphore, #tpu.memory_space<semaphore_mem>> -> memref<1x!tpu.dma_semaphore, #tpu.memory_space<semaphore_mem>>
    %200 = tpu.memref_squeeze %199 : memref<1x!tpu.dma_semaphore, #tpu.memory_space<semaphore_mem>> -> memref<!tpu.dma_semaphore, #tpu.memory_space<semaphore_mem>>
    tpu.wait_dma2 semaphore(%200 : memref<!tpu.dma_semaphore, #tpu.memory_space<semaphore_mem>>) src(%196 : memref<8x128xf32, #tpu.memory_space<any>>) dst(%198 : memref<8x128xf32, #tpu.memory_space<any>>)
    %c0_i32_125 = arith.constant 0 : i32
    %c0_i32_126 = arith.constant 0 : i32
    %c4_i32_127 = arith.constant 4 : i32
    %c0_i32_128 = arith.constant 0 : i32
    %c0_i32_129 = arith.constant 0 : i32
    %201 = tpu.memref_slice %arg2[%c0_i32_125, %c0_i32_128, %c0_i32_129] : memref<8x8x128xf32, #tpu.memory_space<any>> -> memref<1x8x128xf32, #tpu.memory_space<any>>
    %202 = tpu.memref_squeeze %201 : memref<1x8x128xf32, #tpu.memory_space<any>> -> memref<8x128xf32, #tpu.memory_space<any>>
    %c0_i32_130 = arith.constant 0 : i32
    %c0_i32_131 = arith.constant 0 : i32
    %203 = tpu.memref_slice %arg3[%c0_i32_126, %c0_i32_130, %c0_i32_131] : memref<8x8x128xf32, #tpu.memory_space<any>> -> memref<1x8x128xf32, #tpu.memory_space<any>>
    %204 = tpu.memref_squeeze %203 : memref<1x8x128xf32, #tpu.memory_space<any>> -> memref<8x128xf32, #tpu.memory_space<any>>
    %205 = tpu.memref_slice %arg4[%c4_i32_127] : memref<8x!tpu.dma_semaphore, #tpu.memory_space<semaphore_mem>> -> memref<1x!tpu.dma_semaphore, #tpu.memory_space<semaphore_mem>>
    %206 = tpu.memref_squeeze %205 : memref<1x!tpu.dma_semaphore, #tpu.memory_space<semaphore_mem>> -> memref<!tpu.dma_semaphore, #tpu.memory_space<semaphore_mem>>
    tpu.wait_dma2 semaphore(%206 : memref<!tpu.dma_semaphore, #tpu.memory_space<semaphore_mem>>) src(%202 : memref<8x128xf32, #tpu.memory_space<any>>) dst(%204 : memref<8x128xf32, #tpu.memory_space<any>>)
    %c0_i32_132 = arith.constant 0 : i32
    %c0_i32_133 = arith.constant 0 : i32
    %c5_i32_134 = arith.constant 5 : i32
    %c0_i32_135 = arith.constant 0 : i32
    %c0_i32_136 = arith.constant 0 : i32
    %207 = tpu.memref_slice %arg2[%c0_i32_132, %c0_i32_135, %c0_i32_136] : memref<8x8x128xf32, #tpu.memory_space<any>> -> memref<1x8x128xf32, #tpu.memory_space<any>>
    %208 = tpu.memref_squeeze %207 : memref<1x8x128xf32, #tpu.memory_space<any>> -> memref<8x128xf32, #tpu.memory_space<any>>
    %c0_i32_137 = arith.constant 0 : i32
    %c0_i32_138 = arith.constant 0 : i32
    %209 = tpu.memref_slice %arg3[%c0_i32_133, %c0_i32_137, %c0_i32_138] : memref<8x8x128xf32, #tpu.memory_space<any>> -> memref<1x8x128xf32, #tpu.memory_space<any>>
    %210 = tpu.memref_squeeze %209 : memref<1x8x128xf32, #tpu.memory_space<any>> -> memref<8x128xf32, #tpu.memory_space<any>>
    %211 = tpu.memref_slice %arg4[%c5_i32_134] : memref<8x!tpu.dma_semaphore, #tpu.memory_space<semaphore_mem>> -> memref<1x!tpu.dma_semaphore, #tpu.memory_space<semaphore_mem>>
    %212 = tpu.memref_squeeze %211 : memref<1x!tpu.dma_semaphore, #tpu.memory_space<semaphore_mem>> -> memref<!tpu.dma_semaphore, #tpu.memory_space<semaphore_mem>>
    tpu.wait_dma2 semaphore(%212 : memref<!tpu.dma_semaphore, #tpu.memory_space<semaphore_mem>>) src(%208 : memref<8x128xf32, #tpu.memory_space<any>>) dst(%210 : memref<8x128xf32, #tpu.memory_space<any>>)
    %c0_i32_139 = arith.constant 0 : i32
    %c0_i32_140 = arith.constant 0 : i32
    %c6_i32_141 = arith.constant 6 : i32
    %c0_i32_142 = arith.constant 0 : i32
    %c0_i32_143 = arith.constant 0 : i32
    %213 = tpu.memref_slice %arg2[%c0_i32_139, %c0_i32_142, %c0_i32_143] : memref<8x8x128xf32, #tpu.memory_space<any>> -> memref<1x8x128xf32, #tpu.memory_space<any>>
    %214 = tpu.memref_squeeze %213 : memref<1x8x128xf32, #tpu.memory_space<any>> -> memref<8x128xf32, #tpu.memory_space<any>>
    %c0_i32_144 = arith.constant 0 : i32
    %c0_i32_145 = arith.constant 0 : i32
    %215 = tpu.memref_slice %arg3[%c0_i32_140, %c0_i32_144, %c0_i32_145] : memref<8x8x128xf32, #tpu.memory_space<any>> -> memref<1x8x128xf32, #tpu.memory_space<any>>
    %216 = tpu.memref_squeeze %215 : memref<1x8x128xf32, #tpu.memory_space<any>> -> memref<8x128xf32, #tpu.memory_space<any>>
    %217 = tpu.memref_slice %arg4[%c6_i32_141] : memref<8x!tpu.dma_semaphore, #tpu.memory_space<semaphore_mem>> -> memref<1x!tpu.dma_semaphore, #tpu.memory_space<semaphore_mem>>
    %218 = tpu.memref_squeeze %217 : memref<1x!tpu.dma_semaphore, #tpu.memory_space<semaphore_mem>> -> memref<!tpu.dma_semaphore, #tpu.memory_space<semaphore_mem>>
    tpu.wait_dma2 semaphore(%218 : memref<!tpu.dma_semaphore, #tpu.memory_space<semaphore_mem>>) src(%214 : memref<8x128xf32, #tpu.memory_space<any>>) dst(%216 : memref<8x128xf32, #tpu.memory_space<any>>)
    %c0_i32_146 = arith.constant 0 : i32
    %c0_i32_147 = arith.constant 0 : i32
    %c7_i32_148 = arith.constant 7 : i32
    %c0_i32_149 = arith.constant 0 : i32
    %c0_i32_150 = arith.constant 0 : i32
    %219 = tpu.memref_slice %arg2[%c0_i32_146, %c0_i32_149, %c0_i32_150] : memref<8x8x128xf32, #tpu.memory_space<any>> -> memref<1x8x128xf32, #tpu.memory_space<any>>
    %220 = tpu.memref_squeeze %219 : memref<1x8x128xf32, #tpu.memory_space<any>> -> memref<8x128xf32, #tpu.memory_space<any>>
    %c0_i32_151 = arith.constant 0 : i32
    %c0_i32_152 = arith.constant 0 : i32
    %221 = tpu.memref_slice %arg3[%c0_i32_147, %c0_i32_151, %c0_i32_152] : memref<8x8x128xf32, #tpu.memory_space<any>> -> memref<1x8x128xf32, #tpu.memory_space<any>>
    %222 = tpu.memref_squeeze %221 : memref<1x8x128xf32, #tpu.memory_space<any>> -> memref<8x128xf32, #tpu.memory_space<any>>
    %223 = tpu.memref_slice %arg4[%c7_i32_148] : memref<8x!tpu.dma_semaphore, #tpu.memory_space<semaphore_mem>> -> memref<1x!tpu.dma_semaphore, #tpu.memory_space<semaphore_mem>>
    %224 = tpu.memref_squeeze %223 : memref<1x!tpu.dma_semaphore, #tpu.memory_space<semaphore_mem>> -> memref<!tpu.dma_semaphore, #tpu.memory_space<semaphore_mem>>
    tpu.wait_dma2 semaphore(%224 : memref<!tpu.dma_semaphore, #tpu.memory_space<semaphore_mem>>) src(%220 : memref<8x128xf32, #tpu.memory_space<any>>) dst(%222 : memref<8x128xf32, #tpu.memory_space<any>>)
    return
  }
}

</mosaic_0001>

<llo_original>
// kernel: tpu_custom_call.1
$region0: #{tpu_custom_call.1}
  #allocation0 [shape = 'u32[]', space=smem, size = 0x4, offset = 0x4, fixed_abs, tag = 'smem constant byte address 0x4 - core index']
  #allocation1 [shape = 'u32[144,128]{1,0:T(1,128)}', space=vmem, size = 0x12000, scoped, tag = 'internal scratch']
  #allocation2 [shape = 's32[8]{0}', space=sflag, size = 0x20, scoped, tag = 'scratch operand']
  #allocation3 [shape = 's32[1]{0}', space=sflag, size = 0x4, scoped, tag = 'scoped memory for tpu_custom_call.1']
  #allocation4 [shape = 'u8[512]{0}', space=smem, size = 0x200, scoped, tag = 'prefetched SMEM operand 0']
  #allocation5 [shape = 's32[]', space=sflag, size = 0x4, offset = 0, fixed_abs, tag = 'sflag constant byte address 0x0 - dummy sync flag']
  #allocation6 [shape = 'u32[0]{0}', space=smem, size = 0, offset = 0, fixed_abs, tag = 'smem constant byte address 0x0 - null']
  #allocation7 [shape = 's32[]', space=sflag, size = 0x4, offset = 0, fixed_abs, tag = 'sflag constant byte address 0x0 - dummy sync flag']
  #allocation8 [shape = 'u32[0]{0}', space=smem, size = 0, offset = 0, fixed_abs, tag = 'smem constant byte address 0x0 - null']
  #allocation9 [shape = 's32[]', space=sflag, size = 0x4, offset = 0, fixed_abs, tag = 'sflag constant byte address 0x0 - dummy sync flag']
  #allocation10 [shape = 'u32[0]{0}', space=smem, size = 0, offset = 0, fixed_abs, tag = 'smem constant byte address 0x0 - null']
  #allocation11 [shape = 's32[]', space=sflag, size = 0x4, offset = 0, fixed_abs, tag = 'sflag constant byte address 0x0 - dummy sync flag']
  #allocation12 [shape = 'u32[0]{0}', space=smem, size = 0, offset = 0, fixed_abs, tag = 'smem constant byte address 0x0 - null']
  #allocation13 [shape = 's32[]', space=sflag, size = 0x4, offset = 0, fixed_abs, tag = 'sflag constant byte address 0x0 - dummy sync flag']
  #allocation14 [shape = 'u32[0]{0}', space=smem, size = 0, offset = 0, fixed_abs, tag = 'smem constant byte address 0x0 - null']
  #allocation15 [shape = 's32[]', space=sflag, size = 0x4, offset = 0, fixed_abs, tag = 'sflag constant byte address 0x0 - dummy sync flag']
  #allocation16 [shape = 'u32[0]{0}', space=smem, size = 0, offset = 0, fixed_abs, tag = 'smem constant byte address 0x0 - null']
  #allocation17 [shape = 's32[]', space=sflag, size = 0x4, offset = 0, fixed_abs, tag = 'sflag constant byte address 0x0 - dummy sync flag']
  #allocation18 [shape = 'u32[0]{0}', space=smem, size = 0, offset = 0, fixed_abs, tag = 'smem constant byte address 0x0 - null']
  #allocation19 [shape = 's32[]', space=sflag, size = 0x4, offset = 0, fixed_abs, tag = 'sflag constant byte address 0x0 - dummy sync flag']
  #allocation20 [shape = 'u32[0]{0}', space=smem, size = 0, offset = 0, fixed_abs, tag = 'smem constant byte address 0x0 - null']
  %s0 = inlined_call_operand.hbm [shape: s32[8], index: 0, kind: input, shape index: {}]
  %s1 = inlined_call_operand.hbm [shape: f32[8,8,128], index: 1, kind: input, shape index: {}]
  %s2 = inlined_call_operand.hbm [shape: f32[8,8,128], index: 2, kind: output, shape index: {}]
  %s3 = sld [smem:[#allocation0]]
  $region2: #{tpu_custom_call.1} parent=0
    _
  %s5 = ssub.s32 1, %s3
  %s6 = scalar_select 0, %s5, %s3
  %8 = dma.hbm_to_smem %s0, 16, [#allocation4], [#allocation3]
  %9 = dma.done [#allocation3], 16
  %10 = sfence
  %s11 = smul.u32 0, 8
  %s12 = sld [smem:[#allocation4 + %s11]]
  %s13 = smul.u32 %s12, 8
  %s14 = smul.addr %s13, 16
  %s15 = scalar_lea.hbm %s1, %s14
  %s16 = smul.u32 %s11, 8
  %s17 = smul.addr %s16, 16
  %s18 = scalar_lea.hbm %s2, %s17
  %s20 = sshll.u32 1, 14
  %s21 = sxor.u32 4294967295, %s20
  %s24 = sshll.u32 3, 24
  %s25 = sxor.u32 4294967295, %s24
  %s26 = sand.u32 0, %s25
  %s28 = sor.u32 %s26, 0
  %31 = dma.general %s15, 128, %s18, [#allocation2], [#allocation5], [#allocation6], %s28, 0
  %s32 = sadd.s32 %s11, 1
  %s33 = sld [smem:[#allocation4 + %s32]]
  %s34 = smul.u32 %s33, 8
  %s35 = smul.addr %s34, 16
  %s36 = scalar_lea.hbm %s1, %s35
  %s37 = smul.u32 %s32, 8
  %s38 = smul.addr %s37, 16
  %s39 = scalar_lea.hbm %s2, %s38
  %s40 = scalar_lea.sflag [#allocation2], 1
  %s42 = sshll.u32 1, 14
  %s43 = sxor.u32 4294967295, %s42
  %s46 = sshll.u32 3, 24
  %s47 = sxor.u32 4294967295, %s46
  %s48 = sand.u32 0, %s47
  %s50 = sor.u32 %s48, 0
  %53 = dma.general %s36, 128, %s39, %s40, [#allocation7], [#allocation8], %s50, 0
  %s54 = sadd.s32 %s11, 2
  %s55 = sld [smem:[#allocation4 + %s54]]
  %s56 = smul.u32 %s55, 8
  %s57 = smul.addr %s56, 16
  %s58 = scalar_lea.hbm %s1, %s57
  %s59 = smul.u32 %s54, 8
  %s60 = smul.addr %s59, 16
  %s61 = scalar_lea.hbm %s2, %s60
  %s62 = scalar_lea.sflag [#allocation2], 2
  %s64 = sshll.u32 1, 14
  %s65 = sxor.u32 4294967295, %s64
  %s68 = sshll.u32 3, 24
  %s69 = sxor.u32 4294967295, %s68
  %s70 = sand.u32 0, %s69
  %s72 = sor.u32 %s70, 0
  %75 = dma.general %s58, 128, %s61, %s62, [#allocation9], [#allocation10], %s72, 0
  %s76 = sadd.s32 %s11, 3
  %s77 = sld [smem:[#allocation4 + %s76]]
  %s78 = smul.u32 %s77, 8
  %s79 = smul.addr %s78, 16
  %s80 = scalar_lea.hbm %s1, %s79
  %s81 = smul.u32 %s76, 8
  %s82 = smul.addr %s81, 16
  %s83 = scalar_lea.hbm %s2, %s82
  %s84 = scalar_lea.sflag [#allocation2], 3
  %s86 = sshll.u32 1, 14
  %s87 = sxor.u32 4294967295, %s86
  %s90 = sshll.u32 3, 24
  %s91 = sxor.u32 4294967295, %s90
  %s92 = sand.u32 0, %s91
  %s94 = sor.u32 %s92, 0
  %97 = dma.general %s80, 128, %s83, %s84, [#allocation11], [#allocation12], %s94, 0
  %s98 = sadd.s32 %s11, 4
  %s99 = sld [smem:[#allocation4 + %s98]]
  %s100 = smul.u32 %s99, 8
  %s101 = smul.addr %s100, 16
  %s102 = scalar_lea.hbm %s1, %s101
  %s103 = smul.u32 %s98, 8
  %s104 = smul.addr %s103, 16
  %s105 = scalar_lea.hbm %s2, %s104
  %s106 = scalar_lea.sflag [#allocation2], 4
  %s108 = sshll.u32 1, 14
  %s109 = sxor.u32 4294967295, %s108
  %s112 = sshll.u32 3, 24
  %s113 = sxor.u32 4294967295, %s112
  %s114 = sand.u32 0, %s113
  %s116 = sor.u32 %s114, 0
  %119 = dma.general %s102, 128, %s105, %s106, [#allocation13], [#allocation14], %s116, 0
  %s120 = sadd.s32 %s11, 5
  %s121 = sld [smem:[#allocation4 + %s120]]
  %s122 = smul.u32 %s121, 8
  %s123 = smul.addr %s122, 16
  %s124 = scalar_lea.hbm %s1, %s123
  %s125 = smul.u32 %s120, 8
  %s126 = smul.addr %s125, 16
  %s127 = scalar_lea.hbm %s2, %s126
  %s128 = scalar_lea.sflag [#allocation2], 5
  %s130 = sshll.u32 1, 14
  %s131 = sxor.u32 4294967295, %s130
  %s134 = sshll.u32 3, 24
  %s135 = sxor.u32 4294967295, %s134
  %s136 = sand.u32 0, %s135
  %s138 = sor.u32 %s136, 0
  %141 = dma.general %s124, 128, %s127, %s128, [#allocation15], [#allocation16], %s138, 0
  %s142 = sadd.s32 %s11, 6
  %s143 = sld [smem:[#allocation4 + %s142]]
  %s144 = smul.u32 %s143, 8
  %s145 = smul.addr %s144, 16
  %s146 = scalar_lea.hbm %s1, %s145
  %s147 = smul.u32 %s142, 8
  %s148 = smul.addr %s147, 16
  %s149 = scalar_lea.hbm %s2, %s148
  %s150 = scalar_lea.sflag [#allocation2], 6
  %s152 = sshll.u32 1, 14
  %s153 = sxor.u32 4294967295, %s152
  %s156 = sshll.u32 3, 24
  %s157 = sxor.u32 4294967295, %s156
  %s158 = sand.u32 0, %s157
  %s160 = sor.u32 %s158, 0
  %163 = dma.general %s146, 128, %s149, %s150, [#allocation17], [#allocation18], %s160, 0
  %s164 = sadd.s32 %s11, 7
  %s165 = sld [smem:[#allocation4 + %s164]]
  %s166 = smul.u32 %s165, 8
  %s167 = smul.addr %s166, 16
  %s168 = scalar_lea.hbm %s1, %s167
  %s169 = smul.u32 %s164, 8
  %s170 = smul.addr %s169, 16
  %s171 = scalar_lea.hbm %s2, %s170
  %s172 = scalar_lea.sflag [#allocation2], 7
  %s174 = sshll.u32 1, 14
  %s175 = sxor.u32 4294967295, %s174
  %s178 = sshll.u32 3, 24
  %s179 = sxor.u32 4294967295, %s178
  %s180 = sand.u32 0, %s179
  %s182 = sor.u32 %s180, 0
  %185 = dma.general %s168, 128, %s171, %s172, [#allocation19], [#allocation20], %s182, 0
  %s186 = smul.u32 8, 1
  %s187 = sshll.u32 %s186, 4
  %188 = dma.done [#allocation2], %s187
  %s189 = sshll.u32 %s186, 4
  %190 = dma.done %s40, %s189
  %s191 = sshll.u32 %s186, 4
  %192 = dma.done %s62, %s191
  %s193 = sshll.u32 %s186, 4
  %194 = dma.done %s84, %s193
  %s195 = sshll.u32 %s186, 4
  %196 = dma.done %s106, %s195
  %s197 = sshll.u32 %s186, 4
  %198 = dma.done %s128, %s197
  %s199 = sshll.u32 %s186, 4
  %200 = dma.done %s150, %s199
  %s201 = sshll.u32 %s186, 4
  %202 = dma.done %s172, %s201
  %203 = vsyncmov [#allocation2]
  %s204 = vpop.sfrf %203
  %p205 = scmp.eq.s32.totalorder %s204, 0
  %p206 = pneg %p205
  %208 = shalt.err (%p206)
  %s209 = scalar_lea.sflag [#allocation2], 1
  %210 = vsyncmov %s209
  %s211 = vpop.sfrf %210
  %p212 = scmp.eq.s32.totalorder %s211, 0
  %p213 = pneg %p212
  %215 = shalt.err (%p213)
  %s216 = scalar_lea.sflag [#allocation2], 2
  %217 = vsyncmov %s216
  %s218 = vpop.sfrf %217
  %p219 = scmp.eq.s32.totalorder %s218, 0
  %p220 = pneg %p219
  %222 = shalt.err (%p220)
  %s223 = scalar_lea.sflag [#allocation2], 3
  %224 = vsyncmov %s223
  %s225 = vpop.sfrf %224
  %p226 = scmp.eq.s32.totalorder %s225, 0
  %p227 = pneg %p226
  %229 = shalt.err (%p227)
  %s230 = scalar_lea.sflag [#allocation2], 4
  %231 = vsyncmov %s230
  %s232 = vpop.sfrf %231
  %p233 = scmp.eq.s32.totalorder %s232, 0
  %p234 = pneg %p233
  %236 = shalt.err (%p234)
  %s237 = scalar_lea.sflag [#allocation2], 5
  %238 = vsyncmov %s237
  %s239 = vpop.sfrf %238
  %p240 = scmp.eq.s32.totalorder %s239, 0
  %p241 = pneg %p240
  %243 = shalt.err (%p241)
  %s244 = scalar_lea.sflag [#allocation2], 6
  %245 = vsyncmov %s244
  %s246 = vpop.sfrf %245
  %p247 = scmp.eq.s32.totalorder %s246, 0
  %p248 = pneg %p247
  %250 = shalt.err (%p248)
  %s251 = scalar_lea.sflag [#allocation2], 7
  %252 = vsyncmov %s251
  %s253 = vpop.sfrf %252
  %p254 = scmp.eq.s32.totalorder %s253, 0
  %p255 = pneg %p254
  %257 = shalt.err (%p255)

</llo_original>
